<compile_context>
chip_gen: v6e
topology: v6e:2x2x1
jax: 0.10.0
libtpu: 0.0.40
codegen_flags: <defaults>
</compile_context>

<pallas_src>
import math
import functools

import jax
import jax.numpy as jnp
from jax.experimental import pallas as pl
from jax.experimental.pallas import tpu as pltpu


def _attention_kernel(emb_ref, w_ref, b_ref, gamma_ref, beta_ref,
                      sum_ref, att_ref, *, eps, inv_sqrt_l):
    # emb_ref:   (Bt, L, H)  batch tile of embeddings (VMEM, native dtype)
    # w_ref:     (1, H)      Linear weight row (VMEM, resident)
    # b_ref:     (1,)        Linear bias (SMEM scalar)
    # gamma_ref: (1, H)      LayerNorm scale (VMEM, resident)
    # beta_ref:  (1, H)      LayerNorm shift (VMEM, resident)
    # sum_ref:   (Bt, H)     output summary vectors
    # att_ref:   (Bt, L)     output attention rates (lane-dense; reshaped outside)
    emb = emb_ref[...]                                   # keep native dtype, no f32 copy
    w = w_ref[...].astype(jnp.float32)                   # (1, H)
    bias = b_ref[0]                                      # scalar (SMEM)

    # Linear(H -> 1) + ReLU: broadcast-multiply along lanes + lane reduce over H.
    scores = jnp.sum(emb * w[None, :, :], axis=2) + bias  # (Bt, L) f32
    scores = jnp.maximum(scores, 0.0)

    # softmax over the sequence axis.
    m = jnp.max(scores, axis=1, keepdims=True)
    e = jnp.exp(scores - m)
    denom = jnp.sum(e, axis=1, keepdims=True)
    # exact reciprocal keeps the 1e-5 match with the reference.
    att = e * pl.reciprocal(denom, approx=False)           # (Bt, L) f32
    att_ref[...] = att.astype(att_ref.dtype)

    # Weighted sum over L: VPU broadcast-multiply + reduce, f32 accumulation.
    s = jnp.sum(att[:, :, None] * emb, axis=1) * inv_sqrt_l  # (Bt, H) f32

    # LayerNorm over hidden (biased variance, eps inside rsqrt like PyTorch).
    mean = jnp.mean(s, axis=1, keepdims=True)
    centered = s - mean
    var = jnp.mean(centered * centered, axis=1, keepdims=True)
    normed = centered * jax.lax.rsqrt(var + eps)
    out = normed * gamma_ref[...].astype(jnp.float32) + beta_ref[...].astype(jnp.float32)
    sum_ref[...] = out.astype(sum_ref.dtype)


def _tpu_tuning():
    """Pick block-size / VMEM-limit targets per TPU generation (safe fallback)."""
    vmem_bytes = None
    try:
        vmem_bytes = int(pltpu.get_tpu_info().vmem_capacity_bytes)
    except Exception:
        vmem_bytes = None
    if vmem_bytes is None:
        # Unknown chip: conservative settings that fit every generation.
        return dict(target_block_bytes=4 << 20, min_steps=2,
                    vmem_limit_bytes=32 << 20)
    if vmem_bytes <= (64 << 20):
        # v7x-class: 64 MiB VMEM/TC, 2 TensorCores -> small blocks, >=4 steps
        # so each core keeps double-buffering.
        return dict(target_block_bytes=4 << 20, min_steps=4,
                    vmem_limit_bytes=32 << 20)
    # v5e / v6e class: 128 MiB VMEM, single TensorCore -> bigger blocks.
    return dict(target_block_bytes=8 << 20, min_steps=2,
                vmem_limit_bytes=64 << 20)


def _choose_batch_tiling(B, L, H, itemsize, *, target_block_bytes, min_steps):
    """Pad B to a multiple of 8 and pick a sublane-aligned batch tile bt.

    Returns (B_pad, bt) with bt % 8 == 0, bt | B_pad, and the (bt, L, H) emb
    block at most ~target_block_bytes when possible.
    """
    per_batch = max(1, L * H * itemsize)
    max_bt = max(8, (target_block_bytes // per_batch) // 8 * 8)
    b_pad = ((B + 7) // 8) * 8
    cands = [d for d in range(8, b_pad + 1, 8) if b_pad % d == 0]
    good = [d for d in cands if d <= max_bt and b_pad // d >= min_steps]
    if good:
        return b_pad, max(good)
    fits = [d for d in cands if d <= max_bt]
    if fits:
        return b_pad, max(fits)
    return b_pad, min(cands)   # even the smallest aligned tile is oversized; use it


def attention_forward(emb, w, b, gamma, beta, *, eps=1e-5):
    """emb: (B, L, H). w: (H, 1), b: (1,), gamma/beta: (1, H).

    Returns (sum_, att_rate) with shapes (B, H) and (B, L, 1), matching the
    PyTorch module's forward.
    """
    B, L, H = emb.shape
    tuning = _tpu_tuning()
    b_pad, bt = _choose_batch_tiling(
        B, L, H, emb.dtype.itemsize,
        target_block_bytes=tuning["target_block_bytes"],
        min_steps=tuning["min_steps"])

    emb_in = emb
    if b_pad != B:
        emb_in = jnp.pad(emb, ((0, b_pad - B), (0, 0), (0, 0)))

    w_row = w.reshape(1, H).astype(jnp.float32)      # Linear weight as a row
    b_vec = b.reshape(1).astype(jnp.float32)         # Linear bias (SMEM scalar)
    gamma_row = gamma.reshape(1, H)
    beta_row = beta.reshape(1, H)

    grid = (b_pad // bt,)
    kernel = functools.partial(_attention_kernel, eps=eps,
                               inv_sqrt_l=1.0 / math.sqrt(float(L)))
    out_shapes = (
        jax.ShapeDtypeStruct((b_pad, H), emb.dtype),      # sum_
        jax.ShapeDtypeStruct((b_pad, L), jnp.float32),    # att_rate (lane-dense, f32)
    )
    # TODO(synk): if production L / H fall below 128, pad them to lane multiples
    # in this wrapper so the (bt, L) / (bt, H) stores stay unmasked.
    grid_spec = pltpu.PrefetchScalarGridSpec(
        num_scalar_prefetch=0,
        grid=grid,
        in_specs=[
            pl.BlockSpec((bt, L, H), lambda bi: (bi, 0, 0)),            # emb tile
            pl.BlockSpec((1, H), lambda bi: (0, 0)),                    # linear weight row
            pl.BlockSpec(memory_space=pltpu.MemorySpace.SMEM),          # linear bias (scalar)
            pl.BlockSpec((1, H), lambda bi: (0, 0)),                    # ln gamma
            pl.BlockSpec((1, H), lambda bi: (0, 0)),                    # ln beta
        ],
        out_specs=[
            pl.BlockSpec((bt, H), lambda bi: (bi, 0)),
            pl.BlockSpec((bt, L), lambda bi: (bi, 0)),
        ],
    )
    sum_out, att_out = pl.pallas_call(
        kernel,
        out_shape=out_shapes,
        grid_spec=grid_spec,
        compiler_params=pltpu.CompilerParams(
            dimension_semantics=("parallel",),
            vmem_limit_bytes=tuning["vmem_limit_bytes"],
        ),
    )(emb_in, w_row, b_vec, gamma_row, beta_row)
    # PyTorch returns att_rate as (B, L, 1); strip padding and restore that shape.
    return sum_out[:B], att_out[:B].reshape(B, L, 1)


def attention_reference(emb, w, b, gamma, beta, *, eps=1e-5):
    """Pure-JAX reference mirroring the PyTorch forward."""
    B, L, H = emb.shape
    rate = jnp.einsum("blh,ho->blo", emb, w) + b[0]             # (B, L, 1)
    rate = jnp.maximum(rate, 0.0)
    att = jax.nn.softmax(rate, axis=1)                          # (B, L, 1)
    s = jnp.sum(emb * att, axis=1) / math.sqrt(L)               # (B, H)
    mean = jnp.mean(s, axis=-1, keepdims=True)
    var = jnp.mean((s - mean) ** 2, axis=-1, keepdims=True)
    normed = (s - mean) * jax.lax.rsqrt(var + eps)
    return normed * gamma[0] + beta[0], att


if __name__ == "__main__":
    B, L, H = 2, 8, 32
    key = jax.random.PRNGKey(0)
    k_emb, k_w, k_b = jax.random.split(key, 3)

    emb = jax.random.normal(k_emb, (B, L, H), dtype=jnp.float32)

    # Deterministic parameter init (shapes from nn.Linear(H, 1) / nn.LayerNorm(H)).
    bound = 1.0 / math.sqrt(H)
    w = jax.random.uniform(k_w, (H, 1), jnp.float32, -bound, bound)   # Linear weight^T
    b = jax.random.uniform(k_b, (1,), jnp.float32, -bound, bound)     # Linear bias
    gamma = jnp.ones((1, H), jnp.float32)                             # LayerNorm weight
    beta = jnp.zeros((1, H), jnp.float32)                             # LayerNorm bias

    sum_out, att_out = attention_forward(emb, w, b, gamma, beta)
    sum_out = jax.block_until_ready(sum_out)
    att_out = jax.block_until_ready(att_out)

    ref_sum, ref_att = attention_reference(emb, w, b, gamma, beta)
    assert sum_out.shape == (B, H) and att_out.shape == (B, L, 1)
    assert jnp.allclose(sum_out, ref_sum, atol=1e-5, rtol=1e-5)
    assert jnp.allclose(att_out, ref_att, atol=1e-5, rtol=1e-5)

    print("KERNEL_OK")
</pallas_src>

<mosaic_0001>
module attributes {stable_mosaic.version = 11 : i64} {
  func.func @_attention_kernel(%arg0: i32, %arg1: memref<8x8x32xf32, #tpu.memory_space<vmem>>, %arg2: memref<1x32xf32, #tpu.memory_space<vmem>>, %arg3: memref<1xf32, #tpu.memory_space<smem>>, %arg4: memref<1x32xf32, #tpu.memory_space<vmem>>, %arg5: memref<1x32xf32, #tpu.memory_space<vmem>>, %arg6: memref<8x32xf32, #tpu.memory_space<vmem>>, %arg7: memref<8x8xf32, #tpu.memory_space<vmem>>) attributes {dimension_semantics = [#tpu.dimension_semantics<parallel>], iteration_bounds = array<i64: 1>, scalar_prefetch = 0 : i64, scratch_operands = 0 : i64, tpu.core_type = #tpu.core_type<tc>, window_params = [{transform_indices = @transform_0, window_bounds = array<i64: 8, 8, 32>}, {pipeline_mode = #tpu.pipeline_mode<synchronous>, transform_indices = @transform_1, window_bounds = array<i64: 1, 32>}, {transform_indices = @transform_2, window_bounds = array<i64: 1>}, {pipeline_mode = #tpu.pipeline_mode<synchronous>, transform_indices = @transform_3, window_bounds = array<i64: 1, 32>}, {pipeline_mode = #tpu.pipeline_mode<synchronous>, transform_indices = @transform_4, window_bounds = array<i64: 1, 32>}, {transform_indices = @transform_5, window_bounds = array<i64: 8, 32>}, {transform_indices = @transform_6, window_bounds = array<i64: 8, 8>}]} {
    %c0 = arith.constant 0 : index
    %c0_0 = arith.constant 0 : index
    %c0_1 = arith.constant 0 : index
    %0 = vector.load %arg1[%c0, %c0_0, %c0_1] : memref<8x8x32xf32, #tpu.memory_space<vmem>>, vector<8x8x32xf32>
    %c0_2 = arith.constant 0 : index
    %c0_3 = arith.constant 0 : index
    %1 = vector.load %arg2[%c0_2, %c0_3] : memref<1x32xf32, #tpu.memory_space<vmem>>, vector<1x32xf32>
    %c0_4 = arith.constant 0 : index
    %2 = memref.load %arg3[%c0_4] : memref<1xf32, #tpu.memory_space<smem>>
    %3 = vector.shape_cast %1 : vector<1x32xf32> to vector<1x1x32xf32>
    %4 = vector.broadcast %3 : vector<1x1x32xf32> to vector<8x8x32xf32>
    %5 = arith.mulf %0, %4 : vector<8x8x32xf32>
    %cst = arith.constant dense<0.000000e+00> : vector<8x8xf32>
    %6 = vector.multi_reduction <add>, %5, %cst [2] : vector<8x8x32xf32> to vector<8x8xf32>
    %7 = vector.broadcast %2 : f32 to vector<8x8xf32>
    %8 = arith.addf %6, %7 : vector<8x8xf32>
    %cst_5 = arith.constant 0.000000e+00 : f32
    %9 = vector.broadcast %cst_5 : f32 to vector<8x8xf32>
    %10 = arith.maximumf %8, %9 : vector<8x8xf32>
    %cst_6 = arith.constant dense<0xFF800000> : vector<8xf32>
    %11 = vector.multi_reduction <maximumf>, %10, %cst_6 [1] : vector<8x8xf32> to vector<8xf32>
    %12 = vector.shape_cast %11 : vector<8xf32> to vector<8x1xf32>
    %13 = vector.broadcast %12 : vector<8x1xf32> to vector<8x8xf32>
    %14 = arith.subf %10, %13 : vector<8x8xf32>
    %15 = math.exp %14 : vector<8x8xf32>
    %cst_7 = arith.constant dense<0.000000e+00> : vector<8xf32>
    %16 = vector.multi_reduction <add>, %15, %cst_7 [1] : vector<8x8xf32> to vector<8xf32>
    %17 = vector.shape_cast %16 : vector<8xf32> to vector<8x1xf32>
    %18 = tpu.reciprocal %17 : vector<8x1xf32> -> vector<8x1xf32>
    %19 = vector.broadcast %18 : vector<8x1xf32> to vector<8x8xf32>
    %20 = arith.mulf %15, %19 : vector<8x8xf32>
    %c0_8 = arith.constant 0 : index
    %c0_9 = arith.constant 0 : index
    %21 = vector.load %arg7[%c0_8, %c0_9] : memref<8x8xf32, #tpu.memory_space<vmem>>, vector<8x8xf32>
    tpu.vector_store %arg7[%c0_8, %c0_9], %20 {strides = array<i32>} : memref<8x8xf32, #tpu.memory_space<vmem>>, vector<8x8xf32>,
    %22 = vector.shape_cast %20 : vector<8x8xf32> to vector<8x8x1xf32>
    %23 = vector.broadcast %22 : vector<8x8x1xf32> to vector<8x8x32xf32>
    %24 = arith.mulf %23, %0 : vector<8x8x32xf32>
    %cst_10 = arith.constant dense<0.000000e+00> : vector<8x32xf32>
    %25 = vector.multi_reduction <add>, %24, %cst_10 [1] : vector<8x8x32xf32> to vector<8x32xf32>
    %cst_11 = arith.constant 0.353553385 : f32
    %26 = vector.broadcast %cst_11 : f32 to vector<8x32xf32>
    %27 = arith.mulf %25, %26 : vector<8x32xf32>
    %cst_12 = arith.constant dense<0.000000e+00> : vector<8xf32>
    %28 = vector.multi_reduction <add>, %27, %cst_12 [1] : vector<8x32xf32> to vector<8xf32>
    %29 = vector.shape_cast %28 : vector<8xf32> to vector<8x1xf32>
    %cst_13 = arith.constant 3.200000e+01 : f32
    %30 = vector.broadcast %cst_13 : f32 to vector<8x1xf32>
    %31 = arith.divf %29, %30 : vector<8x1xf32>
    %32 = vector.broadcast %31 : vector<8x1xf32> to vector<8x32xf32>
    %33 = arith.subf %27, %32 : vector<8x32xf32>
    %34 = arith.mulf %33, %33 : vector<8x32xf32>
    %cst_14 = arith.constant dense<0.000000e+00> : vector<8xf32>
    %35 = vector.multi_reduction <add>, %34, %cst_14 [1] : vector<8x32xf32> to vector<8xf32>
    %36 = vector.shape_cast %35 : vector<8xf32> to vector<8x1xf32>
    %cst_15 = arith.constant 3.200000e+01 : f32
    %37 = vector.broadcast %cst_15 : f32 to vector<8x1xf32>
    %38 = arith.divf %36, %37 : vector<8x1xf32>
    %cst_16 = arith.constant 9.99999974E-6 : f32
    %39 = vector.broadcast %cst_16 : f32 to vector<8x1xf32>
    %40 = arith.addf %38, %39 : vector<8x1xf32>
    %41 = math.rsqrt %40 : vector<8x1xf32>
    %42 = vector.broadcast %41 : vector<8x1xf32> to vector<8x32xf32>
    %43 = arith.mulf %33, %42 : vector<8x32xf32>
    %c0_17 = arith.constant 0 : index
    %c0_18 = arith.constant 0 : index
    %44 = vector.load %arg4[%c0_17, %c0_18] : memref<1x32xf32, #tpu.memory_space<vmem>>, vector<1x32xf32>
    %45 = vector.broadcast %44 : vector<1x32xf32> to vector<8x32xf32>
    %46 = arith.mulf %43, %45 : vector<8x32xf32>
    %c0_19 = arith.constant 0 : index
    %c0_20 = arith.constant 0 : index
    %47 = vector.load %arg5[%c0_19, %c0_20] : memref<1x32xf32, #tpu.memory_space<vmem>>, vector<1x32xf32>
    %48 = vector.broadcast %47 : vector<1x32xf32> to vector<8x32xf32>
    %49 = arith.addf %46, %48 : vector<8x32xf32>
    %c0_21 = arith.constant 0 : index
    %c0_22 = arith.constant 0 : index
    %50 = vector.load %arg6[%c0_21, %c0_22] : memref<8x32xf32, #tpu.memory_space<vmem>>, vector<8x32xf32>
    tpu.vector_store %arg6[%c0_21, %c0_22], %49 {strides = array<i32>} : memref<8x32xf32, #tpu.memory_space<vmem>>, vector<8x32xf32>,
    return
  }
  func.func @transform_0(%arg0: i32) -> (i32, i32, i32) {
    %c0_i32 = arith.constant 0 : i32
    %c0_i32_0 = arith.constant 0 : i32
    %c0_i32_1 = arith.constant 0 : i32
    return %arg0, %c0_i32, %c0_i32_0 : i32, i32, i32
  }
  func.func @transform_1(%arg0: i32) -> (i32, i32) {
    %c0_i32 = arith.constant 0 : i32
    %c0_i32_0 = arith.constant 0 : i32
    %c0_i32_1 = arith.constant 0 : i32
    return %c0_i32, %c0_i32_0 : i32, i32
  }
  func.func @transform_2(%arg0: i32) -> i32 {
    %c0_i32 = arith.constant 0 : i32
    %c0_i32_0 = arith.constant 0 : i32
    return %c0_i32 : i32
  }
  func.func @transform_3(%arg0: i32) -> (i32, i32) {
    %c0_i32 = arith.constant 0 : i32
    %c0_i32_0 = arith.constant 0 : i32
    %c0_i32_1 = arith.constant 0 : i32
    return %c0_i32, %c0_i32_0 : i32, i32
  }
  func.func @transform_4(%arg0: i32) -> (i32, i32) {
    %c0_i32 = arith.constant 0 : i32
    %c0_i32_0 = arith.constant 0 : i32
    %c0_i32_1 = arith.constant 0 : i32
    return %c0_i32, %c0_i32_0 : i32, i32
  }
  func.func @transform_5(%arg0: i32) -> (i32, i32) {
    %c0_i32 = arith.constant 0 : i32
    %c0_i32_0 = arith.constant 0 : i32
    return %arg0, %c0_i32 : i32, i32
  }
  func.func @transform_6(%arg0: i32) -> (i32, i32) {
    %c0_i32 = arith.constant 0 : i32
    %c0_i32_0 = arith.constant 0 : i32
    return %arg0, %c0_i32 : i32, i32
  }
}

</mosaic_0001>

<llo_original>
// kernel: tpu_custom_call.1
$region0: #{tpu_custom_call.1}
  #allocation0 [shape = 'u32[]', space=smem, size = 0x4, offset = 0x4, fixed_abs, tag = 'smem constant byte address 0x4 - core index']
  #allocation1 [shape = 'u32[144,128]{1,0:T(1,128)}', space=vmem, size = 0x12000, scoped, tag = 'internal scratch']
  #allocation2 [shape = 'f32[1]{0:T(128)S(6)}', space=smem, size = 0x200, scoped, tag = 'scoped memory for tpu_custom_call.1']
  %s0 = inlined_call_operand.hbm [shape: f32[8,8,32], index: 0, kind: input, shape index: {}]
  %s1 = inlined_call_operand.vmem [shape: f32[1,32], index: 1, kind: input, shape index: {}]
  %s2 = inlined_call_operand.<no memory space> [shape: f32[1], index: 2, kind: input, shape index: {}]
  %s3 = inlined_call_operand.vmem [shape: f32[1,32], index: 3, kind: input, shape index: {}]
  %s4 = inlined_call_operand.vmem [shape: f32[1,32], index: 4, kind: input, shape index: {}]
  %s5 = inlined_call_operand.hbm [shape: f32[8,32], index: 5, kind: output, shape index: {0}]
  %s6 = inlined_call_operand.hbm [shape: f32[8,8], index: 6, kind: output, shape index: {1}]
  %7 = xla_tuple %s5, %s6
  %s8 = sld [smem:[#allocation0]]
  $region42: #{tpu_custom_call.1} parent=0
    _
  %s10 = ssub.s32 1, %s8
  %s11 = scalar_select 0, %s10, %s8
  %12 = sst [smem:[#allocation2]] %s2
  $region1: #{tpu_custom_call.1} parent=0
    #allocation3 [shape = 'u8[32768]{0}', space=vmem, size = 0x8000, scoped, tag = 'input window, operand 0, single buffered']
    #allocation4 [shape = 's32[1]{0}', space=sflag, size = 0x4, scoped, tag = 'scoped memory for tpu_custom_call.1']
    #allocation5 [shape = 's32[1]{0}', space=sflag, size = 0x4, scoped, tag = 'scoped memory for tpu_custom_call.1']
    #allocation6 [shape = 'u8[4096]{0}', space=vmem, size = 0x1000, scoped, tag = 'output window, operand 0, single buffered']
    #allocation7 [shape = 'u8[4096]{0}', space=vmem, size = 0x1000, scoped, tag = 'output window, operand 1, single buffered']
    #allocation8 [shape = 's32[1]{0}', space=sflag, size = 0x4, scoped, tag = 'scoped memory for tpu_custom_call.1']
    %13 = vsyncpa [#allocation4], 0
    %14 = vsyncpa [#allocation5], 0
    %15 = vsyncpa [#allocation8], 0
    // Predicated region
    $region2: #{tpu_custom_call.1} parent=1 // pred_check
      _
    $region3: #{tpu_custom_call.1} parent=1 // pred_check_branch
      %17 = sbr.rel (0) target = $region5
    $region4: #{tpu_custom_call.1} parent=1 // pred_region
      %s19 = ssub.s32 1024, 1024
      %20 = vsyncadd [#allocation4], %s19
      %s21 = sshll.u32 [#allocation3], 4
      %s22 = int_to_ptr.vmem [resolvable:$true] %s21
      %27 = dma.hbm_to_vmem [thread:$0]  %s0, 1024, %s22, [#allocation4], 128, 128, 8
    $region5: #{tpu_custom_call.1} parent=1 // pred_fallthru
      _
    // Predicated region
    $region6: #{tpu_custom_call.1} parent=1 // pred_check
      _
    $region7: #{tpu_custom_call.1} parent=1 // pred_check_branch
      %29 = sbr.rel (0) target = $region9
    $region8: #{tpu_custom_call.1} parent=1 // pred_region
      _
    $region9: #{tpu_custom_call.1} parent=1 // pred_fallthru
      _
    // Predicated region
    $region10: #{tpu_custom_call.1} parent=1 // pred_check
      _
    $region11: #{tpu_custom_call.1} parent=1 // pred_check_branch
      %31 = sbr.rel (0) target = $region13
    $region12: #{tpu_custom_call.1} parent=1 // pred_region
      _
    $region13: #{tpu_custom_call.1} parent=1 // pred_fallthru
      _
    // Predicated region
    $region14: #{tpu_custom_call.1} parent=1 // pred_check
      _
    $region15: #{tpu_custom_call.1} parent=1 // pred_check_branch
      %33 = sbr.rel (0) target = $region17
    $region16: #{tpu_custom_call.1} parent=1 // pred_region
      _
    $region17: #{tpu_custom_call.1} parent=1 // pred_fallthru
      _
    // Predicated region
    $region18: #{tpu_custom_call.1} parent=1 // pred_check
      _
    $region19: #{tpu_custom_call.1} parent=1 // pred_check_branch
      %35 = sbr.rel (0) target = $region21
    $region20: #{tpu_custom_call.1} parent=1 // pred_region
      _
    $region21: #{tpu_custom_call.1} parent=1 // pred_fallthru
      _
    // Predicated region
    $region22: #{tpu_custom_call.1} parent=1 // pred_check
      _
    $region23: #{tpu_custom_call.1} parent=1 // pred_check_branch
      %37 = sbr.rel (0) target = $region25
    $region24: #{tpu_custom_call.1} parent=1 // pred_region
      %38 = dma.done [#allocation4], 1024
    $region25: #{tpu_custom_call.1} parent=1 // pred_fallthru
      _
    %v39 = vld [vmem:[#allocation3] sm:$0xff]
    %v40 = vld [vmem:[#allocation3 + $0x8] sm:$0xff]
    %v41 = vld [vmem:[#allocation3 + $0x10] sm:$0xff]
    %v42 = vld [vmem:[#allocation3 + $0x18] sm:$0xff]
    %v43 = vld [vmem:[#allocation3 + $0x20] sm:$0xff]
    %v44 = vld [vmem:[#allocation3 + $0x28] sm:$0xff]
    %v45 = vld [vmem:[#allocation3 + $0x30] sm:$0xff]
    %v46 = vld [vmem:[#allocation3 + $0x38] sm:$0xff]
    %v47 = vld [vmem:[%s1] sm:$0x1]
    %s48 = sld [smem:[#allocation2]]
    %v50 = vlaneseq
    %v51 = vshrl.u32 %v50, 7
    %v52 = vsub.s32 0, %v51
    %v53 = vrot.slane %v47, %v52
    %v55 = vmul.f32 %v39, %v53
    %v56 = vmul.f32 %v40, %v53
    %v57 = vmul.f32 %v41, %v53
    %v58 = vmul.f32 %v42, %v53
    %v59 = vmul.f32 %v43, %v53
    %v60 = vmul.f32 %v44, %v53
    %v61 = vmul.f32 %v45, %v53
    %v62 = vmul.f32 %v46, %v53
    %vm63 = vcmask 261120
    %v64 = vsel %vm63, %v55, 0.0
    %65 = vadd.xlane.f32.xlu0 %v64
    %v66 = vpop.xlane.xlu0 %65
    %v67 = vsel %vm63, %v56, 0.0
    %68 = vadd.xlane.f32.xlu0 %v67
    %v69 = vpop.xlane.xlu0 %68
    %v70 = vsel %vm63, %v57, 0.0
    %71 = vadd.xlane.f32.xlu0 %v70
    %v72 = vpop.xlane.xlu0 %71
    %v73 = vsel %vm63, %v58, 0.0
    %74 = vadd.xlane.f32.xlu0 %v73
    %v75 = vpop.xlane.xlu0 %74
    %v76 = vsel %vm63, %v59, 0.0
    %77 = vadd.xlane.f32.xlu0 %v76
    %v78 = vpop.xlane.xlu0 %77
    %v79 = vsel %vm63, %v60, 0.0
    %80 = vadd.xlane.f32.xlu0 %v79
    %v81 = vpop.xlane.xlu0 %80
    %v82 = vsel %vm63, %v61, 0.0
    %83 = vadd.xlane.f32.xlu0 %v82
    %v84 = vpop.xlane.xlu0 %83
    %v85 = vsel %vm63, %v62, 0.0
    %86 = vadd.xlane.f32.xlu0 %v85
    %v87 = vpop.xlane.xlu0 %86
    %v88 = vstv %s48
    %v89 = vadd.f32 %v66, %v88
    %v90 = vadd.f32 %v69, %v88
    %v91 = vadd.f32 %v72, %v88
    %v92 = vadd.f32 %v75, %v88
    %v93 = vadd.f32 %v78, %v88
    %v94 = vadd.f32 %v81, %v88
    %v95 = vadd.f32 %v84, %v88
    %v96 = vadd.f32 %v87, %v88
    %v97 = vmax.f32 %v89, 0.0
    %v98 = vmax.f32 %v90, 0.0
    %v99 = vmax.f32 %v91, 0.0
    %v100 = vmax.f32 %v92, 0.0
    %v101 = vmax.f32 %v93, 0.0
    %v102 = vmax.f32 %v94, 0.0
    %v103 = vmax.f32 %v95, 0.0
    %v104 = vmax.f32 %v96, 0.0
    %v113 = vlaneseq
    %v114 = vand.u32 %v113, 127
    %v115 = vlaneseq
    %v116 = vshrl.u32 %v115, 7
    %v117 = vsub.s32 %v114, %v116
    %v118 = vrot.slane %v97, %v117
    %v119 = vlaneseq
    %v120 = vshrl.u32 %v119, 7
    %v121 = vsub.s32 %v114, %v120
    %v122 = vrot.slane %v98, %v121
    %v123 = vlaneseq
    %v124 = vshrl.u32 %v123, 7
    %v125 = vsub.s32 %v114, %v124
    %v126 = vrot.slane %v99, %v125
    %v127 = vlaneseq
    %v128 = vshrl.u32 %v127, 7
    %v129 = vsub.s32 %v114, %v128
    %v130 = vrot.slane %v100, %v129
    %v131 = vlaneseq
    %v132 = vshrl.u32 %v131, 7
    %v133 = vsub.s32 %v114, %v132
    %v134 = vrot.slane %v101, %v133
    %v135 = vlaneseq
    %v136 = vshrl.u32 %v135, 7
    %v137 = vsub.s32 %v114, %v136
    %v138 = vrot.slane %v102, %v137
    %v139 = vlaneseq
    %v140 = vshrl.u32 %v139, 7
    %v141 = vsub.s32 %v114, %v140
    %v142 = vrot.slane %v103, %v141
    %v143 = vlaneseq
    %v144 = vshrl.u32 %v143, 7
    %v145 = vsub.s32 %v114, %v144
    %v146 = vrot.slane %v104, %v145
    %vm147 = vcmask 1041409
    %v148 = vsel %vm147, %v122, %v118
    %vm149 = vcmask 1042434
    %v150 = vsel %vm149, %v126, %v148
    %vm151 = vcmask 1043459
    %v152 = vsel %vm151, %v130, %v150
    %vm153 = vcmask 1044484
    %v154 = vsel %vm153, %v134, %v152
    %vm155 = vcmask 1045509
    %v156 = vsel %vm155, %v138, %v154
    %vm157 = vcmask 1046534
    %v158 = vsel %vm157, %v142, %v156
    %vm159 = vcmask 1047559
    %v160 = vsel %vm159, %v146, %v158
    %vm162 = vcmask 64512
    %v163 = vsel %vm162, %v160, -inf
    %164 = vmax.xlane.f32.xlu0 %v163
    %v165 = vpop.xlane.xlu0 %164
    %v167 = vlaneseq
    %v168 = vshrl.u32 %v167, 7
    %v169 = vsub.s32 0, %v168
    %v170 = vrot.slane %v165, %v169
    %v171 = vlaneseq
    %v172 = vshrl.u32 %v171, 7
    %v173 = vsub.s32 1, %v172
    %v174 = vrot.slane %v165, %v173
    %v175 = vlaneseq
    %v176 = vshrl.u32 %v175, 7
    %v177 = vsub.s32 2, %v176
    %v178 = vrot.slane %v165, %v177
    %v179 = vlaneseq
    %v180 = vshrl.u32 %v179, 7
    %v181 = vsub.s32 3, %v180
    %v182 = vrot.slane %v165, %v181
    %v183 = vlaneseq
    %v184 = vshrl.u32 %v183, 7
    %v185 = vsub.s32 4, %v184
    %v186 = vrot.slane %v165, %v185
    %v187 = vlaneseq
    %v188 = vshrl.u32 %v187, 7
    %v189 = vsub.s32 5, %v188
    %v190 = vrot.slane %v165, %v189
    %v191 = vlaneseq
    %v192 = vshrl.u32 %v191, 7
    %v193 = vsub.s32 6, %v192
    %v194 = vrot.slane %v165, %v193
    %v195 = vlaneseq
    %v196 = vshrl.u32 %v195, 7
    %v197 = vsub.s32 7, %v196
    %v198 = vrot.slane %v165, %v197
    %v207 = vsub.f32 %v97, %v170
    %v208 = vsub.f32 %v98, %v174
    %v209 = vsub.f32 %v99, %v178
    %v210 = vsub.f32 %v100, %v182
    %v211 = vsub.f32 %v101, %v186
    %v212 = vsub.f32 %v102, %v190
    %v213 = vsub.f32 %v103, %v194
    %v214 = vsub.f32 %v104, %v198
    %v215 = vmul.f32 %v207, 1.442695
    %v216 = vpow.pop %v215
    %v217 = vmul.f32 %v208, 1.442695
    %v218 = vpow.pop %v217
    %v219 = vmul.f32 %v209, 1.442695
    %v220 = vpow.pop %v219
    %v221 = vmul.f32 %v210, 1.442695
    %v222 = vpow.pop %v221
    %v223 = vmul.f32 %v211, 1.442695
    %v224 = vpow.pop %v223
    %v225 = vmul.f32 %v212, 1.442695
    %v226 = vpow.pop %v225
    %v227 = vmul.f32 %v213, 1.442695
    %v228 = vpow.pop %v227
    %v229 = vmul.f32 %v214, 1.442695
    %v230 = vpow.pop %v229
    %239 = vset.pattern.permute.xlu0 0
    %240 = vperm.xlu0 %239, %v216
    %v241 = vpop.permute.xlu0 %240
    %242 = vset.pattern.permute.xlu0 0
    %243 = vperm.xlu0 %242, %v218
    %v244 = vpop.permute.xlu0 %243
    %245 = vset.pattern.permute.xlu0 0
    %246 = vperm.xlu0 %245, %v220
    %v247 = vpop.permute.xlu0 %246
    %248 = vset.pattern.permute.xlu0 0
    %249 = vperm.xlu0 %248, %v222
    %v250 = vpop.permute.xlu0 %249
    %251 = vset.pattern.permute.xlu0 0
    %252 = vperm.xlu0 %251, %v224
    %v253 = vpop.permute.xlu0 %252
    %254 = vset.pattern.permute.xlu0 0
    %255 = vperm.xlu0 %254, %v226
    %v256 = vpop.permute.xlu0 %255
    %257 = vset.pattern.permute.xlu0 0
    %258 = vperm.xlu0 %257, %v228
    %v259 = vpop.permute.xlu0 %258
    %260 = vset.pattern.permute.xlu0 0
    %261 = vperm.xlu0 %260, %v230
    %v262 = vpop.permute.xlu0 %261
    %v263 = vlaneseq
    %v264 = vshrl.u32 %v263, 7
    %v265 = vsub.s32 %v114, %v264
    %v266 = vrot.slane %v241, %v265
    %v267 = vlaneseq
    %v268 = vshrl.u32 %v267, 7
    %v269 = vsub.s32 %v114, %v268
    %v270 = vrot.slane %v244, %v269
    %v271 = vlaneseq
    %v272 = vshrl.u32 %v271, 7
    %v273 = vsub.s32 %v114, %v272
    %v274 = vrot.slane %v247, %v273
    %v275 = vlaneseq
    %v276 = vshrl.u32 %v275, 7
    %v277 = vsub.s32 %v114, %v276
    %v278 = vrot.slane %v250, %v277
    %v279 = vlaneseq
    %v280 = vshrl.u32 %v279, 7
    %v281 = vsub.s32 %v114, %v280
    %v282 = vrot.slane %v253, %v281
    %v283 = vlaneseq
    %v284 = vshrl.u32 %v283, 7
    %v285 = vsub.s32 %v114, %v284
    %v286 = vrot.slane %v256, %v285
    %v287 = vlaneseq
    %v288 = vshrl.u32 %v287, 7
    %v289 = vsub.s32 %v114, %v288
    %v290 = vrot.slane %v259, %v289
    %v291 = vlaneseq
    %v292 = vshrl.u32 %v291, 7
    %v293 = vsub.s32 %v114, %v292
    %v294 = vrot.slane %v262, %v293
    %v295 = vsel %vm147, %v270, %v266
    %v296 = vsel %vm149, %v274, %v295
    %v297 = vsel %vm151, %v278, %v296
    %v298 = vsel %vm153, %v282, %v297
    %v299 = vsel %vm155, %v286, %v298
    %v300 = vsel %vm157, %v290, %v299
    %v301 = vsel %vm159, %v294, %v300
    %v303 = vsel %vm162, %v301, 0.0
    %304 = vadd.xlane.f32.xlu0 %v303
    %v305 = vpop.xlane.xlu0 %304
    %v306 = vrcp.pop %v305
    %v308 = vlaneseq
    %v309 = vshrl.u32 %v308, 7
    %v310 = vsub.s32 0, %v309
    %v311 = vrot.slane %v306, %v310
    %v312 = vlaneseq
    %v313 = vshrl.u32 %v312, 7
    %v314 = vsub.s32 1, %v313
    %v315 = vrot.slane %v306, %v314
    %v316 = vlaneseq
    %v317 = vshrl.u32 %v316, 7
    %v318 = vsub.s32 2, %v317
    %v319 = vrot.slane %v306, %v318
    %v320 = vlaneseq
    %v321 = vshrl.u32 %v320, 7
    %v322 = vsub.s32 3, %v321
    %v323 = vrot.slane %v306, %v322
    %v324 = vlaneseq
    %v325 = vshrl.u32 %v324, 7
    %v326 = vsub.s32 4, %v325
    %v327 = vrot.slane %v306, %v326
    %v328 = vlaneseq
    %v329 = vshrl.u32 %v328, 7
    %v330 = vsub.s32 5, %v329
    %v331 = vrot.slane %v306, %v330
    %v332 = vlaneseq
    %v333 = vshrl.u32 %v332, 7
    %v334 = vsub.s32 6, %v333
    %v335 = vrot.slane %v306, %v334
    %v336 = vlaneseq
    %v337 = vshrl.u32 %v336, 7
    %v338 = vsub.s32 7, %v337
    %v339 = vrot.slane %v306, %v338
    %v348 = vmul.f32 %v216, %v311
    %v349 = vmul.f32 %v218, %v315
    %v350 = vmul.f32 %v220, %v319
    %v351 = vmul.f32 %v222, %v323
    %v352 = vmul.f32 %v224, %v327
    %v353 = vmul.f32 %v226, %v331
    %v354 = vmul.f32 %v228, %v335
    %v355 = vmul.f32 %v230, %v339
    %364 = vset.pattern.permute.xlu0 0
    %365 = vperm.xlu0 %364, %v348
    %v366 = vpop.permute.xlu0 %365
    %367 = vset.pattern.permute.xlu0 0
    %368 = vperm.xlu0 %367, %v349
    %v369 = vpop.permute.xlu0 %368
    %370 = vset.pattern.permute.xlu0 0
    %371 = vperm.xlu0 %370, %v350
    %v372 = vpop.permute.xlu0 %371
    %373 = vset.pattern.permute.xlu0 0
    %374 = vperm.xlu0 %373, %v351
    %v375 = vpop.permute.xlu0 %374
    %376 = vset.pattern.permute.xlu0 0
    %377 = vperm.xlu0 %376, %v352
    %v378 = vpop.permute.xlu0 %377
    %379 = vset.pattern.permute.xlu0 0
    %380 = vperm.xlu0 %379, %v353
    %v381 = vpop.permute.xlu0 %380
    %382 = vset.pattern.permute.xlu0 0
    %383 = vperm.xlu0 %382, %v354
    %v384 = vpop.permute.xlu0 %383
    %385 = vset.pattern.permute.xlu0 0
    %386 = vperm.xlu0 %385, %v355
    %v387 = vpop.permute.xlu0 %386
    %v388 = vlaneseq
    %v389 = vshrl.u32 %v388, 7
    %v390 = vsub.s32 %v114, %v389
    %v391 = vrot.slane %v366, %v390
    %v392 = vlaneseq
    %v393 = vshrl.u32 %v392, 7
    %v394 = vsub.s32 %v114, %v393
    %v395 = vrot.slane %v369, %v394
    %v396 = vlaneseq
    %v397 = vshrl.u32 %v396, 7
    %v398 = vsub.s32 %v114, %v397
    %v399 = vrot.slane %v372, %v398
    %v400 = vlaneseq
    %v401 = vshrl.u32 %v400, 7
    %v402 = vsub.s32 %v114, %v401
    %v403 = vrot.slane %v375, %v402
    %v404 = vlaneseq
    %v405 = vshrl.u32 %v404, 7
    %v406 = vsub.s32 %v114, %v405
    %v407 = vrot.slane %v378, %v406
    %v408 = vlaneseq
    %v409 = vshrl.u32 %v408, 7
    %v410 = vsub.s32 %v114, %v409
    %v411 = vrot.slane %v381, %v410
    %v412 = vlaneseq
    %v413 = vshrl.u32 %v412, 7
    %v414 = vsub.s32 %v114, %v413
    %v415 = vrot.slane %v384, %v414
    %v416 = vlaneseq
    %v417 = vshrl.u32 %v416, 7
    %v418 = vsub.s32 %v114, %v417
    %v419 = vrot.slane %v387, %v418
    %v420 = vsel %vm147, %v395, %v391
    %v421 = vsel %vm149, %v399, %v420
    %v422 = vsel %vm151, %v403, %v421
    %v423 = vsel %vm153, %v407, %v422
    %v424 = vsel %vm155, %v411, %v423
    %v425 = vsel %vm157, %v415, %v424
    %v426 = vsel %vm159, %v419, %v425
    %428 = vst.msk [vmem:[#allocation7] sm:$0xff] %vm162, %v426
    %v437 = vmul.f32 %v366, %v39
    %v438 = vmul.f32 %v369, %v40
    %v439 = vmul.f32 %v372, %v41
    %v440 = vmul.f32 %v375, %v42
    %v441 = vmul.f32 %v378, %v43
    %v442 = vmul.f32 %v381, %v44
    %v443 = vmul.f32 %v384, %v45
    %v444 = vmul.f32 %v387, %v46
    %v445 = vsel %vm63, %v437, 0.0
    %v446 = vrot.slane %v445, 4
    %v447 = vadd.f32 %v445, %v446
    %v448 = vrot.slane %v447, 2
    %v449 = vadd.f32 %v447, %v448
    %v450 = vrot.slane %v449, 1
    %v451 = vadd.f32 %v449, %v450
    %v452 = vsel %vm63, %v438, 0.0
    %v453 = vrot.slane %v452, 4
    %v454 = vadd.f32 %v452, %v453
    %v455 = vrot.slane %v454, 2
    %v456 = vadd.f32 %v454, %v455
    %v457 = vrot.slane %v456, 1
    %v458 = vadd.f32 %v456, %v457
    %v459 = vsel %vm63, %v439, 0.0
    %v460 = vrot.slane %v459, 4
    %v461 = vadd.f32 %v459, %v460
    %v462 = vrot.slane %v461, 2
    %v463 = vadd.f32 %v461, %v462
    %v464 = vrot.slane %v463, 1
    %v465 = vadd.f32 %v463, %v464
    %v466 = vsel %vm63, %v440, 0.0
    %v467 = vrot.slane %v466, 4
    %v468 = vadd.f32 %v466, %v467
    %v469 = vrot.slane %v468, 2
    %v470 = vadd.f32 %v468, %v469
    %v471 = vrot.slane %v470, 1
    %v472 = vadd.f32 %v470, %v471
    %v473 = vsel %vm63, %v441, 0.0
    %v474 = vrot.slane %v473, 4
    %v475 = vadd.f32 %v473, %v474
    %v476 = vrot.slane %v475, 2
    %v477 = vadd.f32 %v475, %v476
    %v478 = vrot.slane %v477, 1
    %v479 = vadd.f32 %v477, %v478
    %v480 = vsel %vm63, %v442, 0.0
    %v481 = vrot.slane %v480, 4
    %v482 = vadd.f32 %v480, %v481
    %v483 = vrot.slane %v482, 2
    %v484 = vadd.f32 %v482, %v483
    %v485 = vrot.slane %v484, 1
    %v486 = vadd.f32 %v484, %v485
    %v487 = vsel %vm63, %v443, 0.0
    %v488 = vrot.slane %v487, 4
    %v489 = vadd.f32 %v487, %v488
    %v490 = vrot.slane %v489, 2
    %v491 = vadd.f32 %v489, %v490
    %v492 = vrot.slane %v491, 1
    %v493 = vadd.f32 %v491, %v492
    %v494 = vsel %vm63, %v444, 0.0
    %v495 = vrot.slane %v494, 4
    %v496 = vadd.f32 %v494, %v495
    %v497 = vrot.slane %v496, 2
    %v498 = vadd.f32 %v496, %v497
    %v499 = vrot.slane %v498, 1
    %v500 = vadd.f32 %v498, %v499
    %v501 = vmul.f32 %v451, 0.35355338
    %v502 = vmul.f32 %v458, 0.35355338
    %v503 = vmul.f32 %v465, 0.35355338
    %v504 = vmul.f32 %v472, 0.35355338
    %v505 = vmul.f32 %v479, 0.35355338
    %v506 = vmul.f32 %v486, 0.35355338
    %v507 = vmul.f32 %v493, 0.35355338
    %v508 = vmul.f32 %v500, 0.35355338
    %v517 = vsel %vm147, %v502, %v501
    %v518 = vsel %vm149, %v503, %v517
    %v519 = vsel %vm151, %v504, %v518
    %v520 = vsel %vm153, %v505, %v519
    %v521 = vsel %vm155, %v506, %v520
    %v522 = vsel %vm157, %v507, %v521
    %v523 = vsel %vm159, %v508, %v522
    %v525 = vsel %vm63, %v523, 0.0
    %526 = vadd.xlane.f32.xlu0 %v525
    %v527 = vpop.xlane.xlu0 %526
    %v528 = vrcp.pop 32.0
    %v529 = vmul.f32 %v527, %v528
    %v531 = vrot.slane %v529, 1
    %v532 = vrot.slane %v529, 2
    %v533 = vrot.slane %v529, 3
    %v534 = vrot.slane %v529, 4
    %v535 = vrot.slane %v529, 5
    %v536 = vrot.slane %v529, 6
    %v537 = vrot.slane %v529, 7
    %v546 = vsub.f32 %v501, %v529
    %v547 = vsub.f32 %v502, %v531
    %v548 = vsub.f32 %v503, %v532
    %v549 = vsub.f32 %v504, %v533
    %v550 = vsub.f32 %v505, %v534
    %v551 = vsub.f32 %v506, %v535
    %v552 = vsub.f32 %v507, %v536
    %v553 = vsub.f32 %v508, %v537
    %v554 = vmul.f32 %v546, %v546
    %v555 = vmul.f32 %v547, %v547
    %v556 = vmul.f32 %v548, %v548
    %v557 = vmul.f32 %v549, %v549
    %v558 = vmul.f32 %v550, %v550
    %v559 = vmul.f32 %v551, %v551
    %v560 = vmul.f32 %v552, %v552
    %v561 = vmul.f32 %v553, %v553
    %v570 = vrot.slane %v555, 7
    %v571 = vsel %vm147, %v570, %v554
    %v572 = vrot.slane %v556, 6
    %v573 = vsel %vm149, %v572, %v571
    %v574 = vrot.slane %v557, 5
    %v575 = vsel %vm151, %v574, %v573
    %v576 = vrot.slane %v558, 4
    %v577 = vsel %vm153, %v576, %v575
    %v578 = vrot.slane %v559, 3
    %v579 = vsel %vm155, %v578, %v577
    %v580 = vrot.slane %v560, 2
    %v581 = vsel %vm157, %v580, %v579
    %v582 = vrot.slane %v561, 1
    %v583 = vsel %vm159, %v582, %v581
    %v585 = vsel %vm63, %v583, 0.0
    %586 = vadd.xlane.f32.xlu0 %v585
    %v587 = vpop.xlane.xlu0 %586
    %v588 = vmul.f32 %v587, %v528
    %v589 = vadd.f32 %v588, 1e-05
    %v590 = vrsqrt.pop %v589
    %v592 = vrot.slane %v590, 1
    %v593 = vrot.slane %v590, 2
    %v594 = vrot.slane %v590, 3
    %v595 = vrot.slane %v590, 4
    %v596 = vrot.slane %v590, 5
    %v597 = vrot.slane %v590, 6
    %v598 = vrot.slane %v590, 7
    %v607 = vmul.f32 %v546, %v590
    %v608 = vmul.f32 %v547, %v592
    %v609 = vmul.f32 %v548, %v593
    %v610 = vmul.f32 %v549, %v594
    %v611 = vmul.f32 %v550, %v595
    %v612 = vmul.f32 %v551, %v596
    %v613 = vmul.f32 %v552, %v597
    %v614 = vmul.f32 %v553, %v598
    %v615 = vld [vmem:[%s3] sm:$0x1]
    %v617 = vlaneseq
    %v618 = vshrl.u32 %v617, 7
    %v619 = vsub.s32 0, %v618
    %v620 = vrot.slane %v615, %v619
    %v622 = vmul.f32 %v607, %v620
    %v623 = vmul.f32 %v608, %v620
    %v624 = vmul.f32 %v609, %v620
    %v625 = vmul.f32 %v610, %v620
    %v626 = vmul.f32 %v611, %v620
    %v627 = vmul.f32 %v612, %v620
    %v628 = vmul.f32 %v613, %v620
    %v629 = vmul.f32 %v614, %v620
    %v630 = vld [vmem:[%s4] sm:$0x1]
    %v632 = vlaneseq
    %v633 = vshrl.u32 %v632, 7
    %v634 = vsub.s32 0, %v633
    %v635 = vrot.slane %v630, %v634
    %v637 = vadd.f32 %v622, %v635
    %v638 = vadd.f32 %v623, %v635
    %v639 = vadd.f32 %v624, %v635
    %v640 = vadd.f32 %v625, %v635
    %v641 = vadd.f32 %v626, %v635
    %v642 = vadd.f32 %v627, %v635
    %v643 = vadd.f32 %v628, %v635
    %v644 = vadd.f32 %v629, %v635
    %v653 = vrot.slane %v638, 7
    %v654 = vsel %vm147, %v653, %v637
    %v655 = vrot.slane %v639, 6
    %v656 = vsel %vm149, %v655, %v654
    %v657 = vrot.slane %v640, 5
    %v658 = vsel %vm151, %v657, %v656
    %v659 = vrot.slane %v641, 4
    %v660 = vsel %vm153, %v659, %v658
    %v661 = vrot.slane %v642, 3
    %v662 = vsel %vm155, %v661, %v660
    %v663 = vrot.slane %v643, 2
    %v664 = vsel %vm157, %v663, %v662
    %v665 = vrot.slane %v644, 1
    %v666 = vsel %vm159, %v665, %v664
    %668 = vst.msk [vmem:[#allocation6] sm:$0xff] %vm63, %v666
    // Predicated region
    $region26: #{tpu_custom_call.1} parent=1 // pred_check
      _
    $region27: #{tpu_custom_call.1} parent=1 // pred_check_branch
      %670 = sbr.rel (0) target = $region29
    $region28: #{tpu_custom_call.1} parent=1 // pred_region
      %s672 = ssub.s32 128, 128
      %673 = vsyncadd [#allocation5], %s672
      %s675 = sshll.u32 [#allocation6], 4
      %s676 = int_to_ptr.vmem [resolvable:$true] %s675
      %678 = dma.vmem_to_hbm [thread:$0]  %s676, 128, %s5, [#allocation5]
    $region29: #{tpu_custom_call.1} parent=1 // pred_fallthru
      _
    // Predicated region
    $region30: #{tpu_custom_call.1} parent=1 // pred_check
      _
    $region31: #{tpu_custom_call.1} parent=1 // pred_check_branch
      %680 = sbr.rel (0) target = $region33
    $region32: #{tpu_custom_call.1} parent=1 // pred_region
      %s682 = ssub.s32 128, 128
      %683 = vsyncadd [#allocation8], %s682
      %s685 = sshll.u32 [#allocation7], 4
      %s686 = int_to_ptr.vmem [resolvable:$true] %s685
      %688 = dma.vmem_to_hbm [thread:$0]  %s686, 128, %s6, [#allocation8]
    $region33: #{tpu_custom_call.1} parent=1 // pred_fallthru
      _
    // Predicated region
    $region34: #{tpu_custom_call.1} parent=1 // pred_check
      _
    $region35: #{tpu_custom_call.1} parent=1 // pred_check_branch
      %690 = sbr.rel (0) target = $region37
    $region36: #{tpu_custom_call.1} parent=1 // pred_region
      %691 = dma.done [#allocation5], 128
    $region37: #{tpu_custom_call.1} parent=1 // pred_fallthru
      _
    // Predicated region
    $region38: #{tpu_custom_call.1} parent=1 // pred_check
      _
    $region39: #{tpu_custom_call.1} parent=1 // pred_check_branch
      %693 = sbr.rel (0) target = $region41
    $region40: #{tpu_custom_call.1} parent=1 // pred_region
      %694 = dma.done [#allocation8], 128
    $region41: #{tpu_custom_call.1} parent=1 // pred_fallthru
      _
    %695 = vsyncpa [#allocation4], 1
    %696 = vsyncpa [#allocation5], 1
    %697 = vsyncpa [#allocation8], 1

</llo_original>
